<compile_context>
chip_gen: v5e
topology: v5e:2x2
jax: 0.10.0
libtpu: 0.0.40
codegen_flags: <defaults>
</compile_context>

<pallas_src>
import jax
import jax.numpy as jnp
from jax import lax
from jax.experimental import pallas as pl
from jax.experimental.pallas import tpu as pltpu


def add_eye3_kernel(x_ref, out_ref):
    """x_ref, out_ref: (tb, 9) tiles of flattened 3x3 matrices.

    Adds the flattened identity [1,0,0, 0,1,0, 0,0,1]: the diagonal entries of
    a row-major 3x3 flatten sit at column indices 0, 4, 8, i.e. col % 4 == 0.
    """
    x = x_ref[...]                                            # (tb, 9) f32
    col = lax.broadcasted_iota(jnp.int32, x.shape, 1)         # lane index
    eye_flat = jnp.where(col % 4 == 0, 1.0, 0.0).astype(x.dtype)
    out_ref[...] = x + eye_flat


def add_eye3(x):
    """x: (B, 9) float32 -> (B, 3, 3) float32, matching PyTorch AddEye3."""
    B, F = x.shape
    assert F == 9, "AddEye3 expects flattened 3x3 matrices, i.e. (B, 9)"

    # Row tiling: 8-row blocks (sublane-aligned) when possible, otherwise a
    # single full-array block (valid because block dims == full array dims).
    tb = 8 if (B % 8 == 0) else B
    grid = (B // tb,)

    out_flat = pl.pallas_call(
        add_eye3_kernel,
        out_shape=jax.ShapeDtypeStruct((B, 9), x.dtype),
        grid=grid,
        in_specs=[pl.BlockSpec((tb, 9), lambda i: (i, 0))],
        out_specs=pl.BlockSpec((tb, 9), lambda i: (i, 0)),
        compiler_params=pltpu.CompilerParams(
            dimension_semantics=("parallel",),
        ),
    )(x)

    # Pure layout plumbing (no data movement on TPU for a trailing reshape).
    return out_flat.reshape(B, 3, 3)


if __name__ == "__main__":
    key = jax.random.PRNGKey(0)
    B = 2
    x = jax.random.normal(key, (B, 9), jnp.float32)

    out = jax.block_until_ready(add_eye3(x))

    # Reference: exactly what the PyTorch module computes.
    ref = x.reshape(B, 3, 3) + jnp.eye(3, dtype=jnp.float32)[None, :, :]

    assert out.shape == (B, 3, 3)
    assert bool(jnp.allclose(out, ref, atol=1e-6, rtol=0.0))
    print("KERNEL_OK")
</pallas_src>

<mosaic_0001>
module attributes {stable_mosaic.version = 11 : i64} {
  func.func @add_eye3_kernel(%arg0: i32, %arg1: memref<2x9xf32, #tpu.memory_space<vmem>>, %arg2: memref<2x9xf32, #tpu.memory_space<vmem>>) attributes {dimension_semantics = [#tpu.dimension_semantics<parallel>], iteration_bounds = array<i64: 1>, scalar_prefetch = 0 : i64, scratch_operands = 0 : i64, tpu.core_type = #tpu.core_type<tc>, window_params = [{transform_indices = @transform_0, window_bounds = array<i64: 2, 9>}, {transform_indices = @transform_1, window_bounds = array<i64: 2, 9>}]} {
    %c0 = arith.constant 0 : index
    %c0_0 = arith.constant 0 : index
    %0 = vector.load %arg1[%c0, %c0_0] : memref<2x9xf32, #tpu.memory_space<vmem>>, vector<2x9xf32>
    %1 = tpu.iota {dimensions = array<i32: 1>} : vector<2x9xi32>
    %c4_i32 = arith.constant 4 : i32
    %c0_i32 = arith.constant 0 : i32
    %2 = arith.cmpi eq, %c4_i32, %c0_i32 : i32
    %c1_i32 = arith.constant 1 : i32
    %3 = arith.select %2, %c1_i32, %c4_i32 : i32
    %4 = vector.broadcast %3 : i32 to vector<2x9xi32>
    %5 = arith.remsi %1, %4 : vector<2x9xi32>
    %c0_i32_1 = arith.constant 0 : i32
    %6 = vector.broadcast %c0_i32_1 : i32 to vector<2x9xi32>
    %7 = arith.cmpi ne, %5, %6 : vector<2x9xi32>
    %c0_i32_2 = arith.constant 0 : i32
    %8 = vector.broadcast %c0_i32_2 : i32 to vector<2x9xi32>
    %9 = arith.cmpi slt, %5, %8 : vector<2x9xi32>
    %c0_i32_3 = arith.constant 0 : i32
    %10 = arith.cmpi slt, %3, %c0_i32_3 : i32
    %11 = vector.broadcast %10 : i1 to vector<2x9xi1>
    %12 = vector.broadcast %11 : vector<2x9xi1> to vector<2x9xi1>
    %13 = arith.xori %9, %12 : vector<2x9xi1>
    %14 = arith.andi %13, %7 : vector<2x9xi1>
    %15 = vector.broadcast %3 : i32 to vector<2x9xi32>
    %16 = arith.addi %5, %15 : vector<2x9xi32>
    %17 = arith.select %14, %16, %5 : vector<2x9xi1>, vector<2x9xi32>
    %c0_i32_4 = arith.constant 0 : i32
    %18 = vector.broadcast %c0_i32_4 : i32 to vector<2x9xi32>
    %19 = arith.cmpi eq, %17, %18 : vector<2x9xi32>
    %cst = arith.constant 1.000000e+00 : f32
    %cst_5 = arith.constant 0.000000e+00 : f32
    %20 = vector.broadcast %cst : f32 to vector<2x9xf32>
    %21 = vector.broadcast %cst_5 : f32 to vector<2x9xf32>
    %22 = arith.select %19, %20, %21 : vector<2x9xi1>, vector<2x9xf32>
    %23 = arith.addf %0, %22 : vector<2x9xf32>
    %c0_6 = arith.constant 0 : index
    %c0_7 = arith.constant 0 : index
    %24 = vector.load %arg2[%c0_6, %c0_7] : memref<2x9xf32, #tpu.memory_space<vmem>>, vector<2x9xf32>
    tpu.vector_store %arg2[%c0_6, %c0_7], %23 {strides = array<i32>} : memref<2x9xf32, #tpu.memory_space<vmem>>, vector<2x9xf32>,
    return
  }
  func.func @transform_0(%arg0: i32) -> (i32, i32) {
    %c0_i32 = arith.constant 0 : i32
    %c0_i32_0 = arith.constant 0 : i32
    return %arg0, %c0_i32 : i32, i32
  }
  func.func @transform_1(%arg0: i32) -> (i32, i32) {
    %c0_i32 = arith.constant 0 : i32
    %c0_i32_0 = arith.constant 0 : i32
    return %arg0, %c0_i32 : i32, i32
  }
}

</mosaic_0001>

<llo_original>
// kernel: tpu_custom_call.1
$region0: #{tpu_custom_call.1}
  #allocation0 [shape = 'u32[]', space=smem, size = 0x4, offset = 0x4, fixed_abs, tag = 'smem constant byte address 0x4 - core index']
  #allocation1 [shape = 'u32[72,128]{1,0:T(1,128)}', space=vmem, size = 0x9000, scoped, tag = 'internal scratch']
  %s0 = inlined_call_operand.hbm [shape: f32[2,9], index: 0, kind: input, shape index: {}]
  %s1 = inlined_call_operand.hbm [shape: f32[2,9], index: 1, kind: output, shape index: {}]
  %s2 = sld [smem:[#allocation0]]
  $region18: #{tpu_custom_call.1} parent=0
    _
  %s4 = ssub.s32 1, %s2
  %s5 = scalar_select 0, %s4, %s2
  $region1: #{tpu_custom_call.1} parent=0
    #allocation2 [shape = 'u8[1024]{0}', space=vmem, size = 0x400, scoped, tag = 'input window, operand 0, single buffered']
    #allocation3 [shape = 's32[1]{0}', space=sflag, size = 0x4, scoped, tag = 'scoped memory for tpu_custom_call.1']
    #allocation4 [shape = 's32[1]{0}', space=sflag, size = 0x4, scoped, tag = 'scoped memory for tpu_custom_call.1']
    #allocation5 [shape = 'u8[1024]{0}', space=vmem, size = 0x400, scoped, tag = 'output window, operand 0, single buffered']
    %6 = vsyncpa [#allocation3], 0
    %7 = vsyncpa [#allocation4], 0
    // Predicated region
    $region2: #{tpu_custom_call.1} parent=1 // pred_check
      _
    $region3: #{tpu_custom_call.1} parent=1 // pred_check_branch
      %9 = sbr.rel (0) target = $region5
    $region4: #{tpu_custom_call.1} parent=1 // pred_region
      %11 = vsyncadd [#allocation3], 0
      %s13 = sshll.u32 %s0, 4
      %s14 = int_to_ptr.hbm [resolvable:$true] %s13
      %s15 = sshll.u32 [#allocation2], 4
      %s16 = int_to_ptr.vmem [resolvable:$true] %s15
      %18 = dma.hbm_to_vmem [thread:$0]  %s14, 32, %s16, [#allocation3]
    $region5: #{tpu_custom_call.1} parent=1 // pred_fallthru
      _
    // Predicated region
    $region6: #{tpu_custom_call.1} parent=1 // pred_check
      _
    $region7: #{tpu_custom_call.1} parent=1 // pred_check_branch
      %20 = sbr.rel (0) target = $region9
    $region8: #{tpu_custom_call.1} parent=1 // pred_region
      %22 = dma.done [#allocation3], 32
    $region9: #{tpu_custom_call.1} parent=1 // pred_fallthru
      _
    %v23 = vld [vmem:[#allocation2] sm:$0x3]
    %v24 = vlaneseq
    %v25 = vand.u32 %v24, 127
    %vm26 = vcmp.lt.s32.totalorder %v25, 0
    %v27 = vsub.s32 0, %v25
    %v28 = vsel %vm26, %v27, %v25
    %v29 = vshrl.u32 %v28, 2
    %v30 = vand.u32 %v28, 3
    %v31 = vsub.s32 0, %v30
    %v32 = vsel %vm26, %v31, %v30
    %vm33 = vcmp.ne.s32.totalorder %v32, 0
    %vm34 = vcmp.lt.s32.totalorder %v32, 0
    %vm35 = vmand %vm34, %vm33
    %v36 = vadd.s32 %v32, 4
    %v37 = vsel %vm35, %v36, %v32
    %vm38 = vcmp.eq.s32.totalorder %v37, 0
    %v39 = vsel %vm38, 1.0, 0.0
    %v40 = vadd.f32 %v23, %v39
    %vm41 = vcmask 66560
    %42 = vst.msk [vmem:[#allocation5] sm:$0x3] %vm41, %v40
    // Predicated region
    $region10: #{tpu_custom_call.1} parent=1 // pred_check
      _
    $region11: #{tpu_custom_call.1} parent=1 // pred_check_branch
      %44 = sbr.rel (0) target = $region13
    $region12: #{tpu_custom_call.1} parent=1 // pred_region
      %46 = vsyncadd [#allocation4], 0
      %s48 = sshll.u32 [#allocation5], 4
      %s49 = int_to_ptr.vmem [resolvable:$true] %s48
      %s50 = sshll.u32 %s1, 4
      %s51 = int_to_ptr.hbm [resolvable:$true] %s50
      %53 = dma.vmem_to_hbm [thread:$0]  %s49, 32, %s51, [#allocation4]
    $region13: #{tpu_custom_call.1} parent=1 // pred_fallthru
      _
    // Predicated region
    $region14: #{tpu_custom_call.1} parent=1 // pred_check
      _
    $region15: #{tpu_custom_call.1} parent=1 // pred_check_branch
      %55 = sbr.rel (0) target = $region17
    $region16: #{tpu_custom_call.1} parent=1 // pred_region
      %57 = dma.done [#allocation4], 32
    $region17: #{tpu_custom_call.1} parent=1 // pred_fallthru
      _
    %58 = vsyncpa [#allocation3], 1
    %59 = vsyncpa [#allocation4], 1

</llo_original>
